<compile_context>
chip_gen: v5e
topology: v5e:2x2
jax: 0.10.0
libtpu: 0.0.40
codegen_flags: <defaults>
</compile_context>

<pallas_src>
import functools

import jax
import jax.numpy as jnp
from jax.experimental import pallas as pl
from jax.experimental.pallas import tpu as pltpu

_BASE_STATS = 5            # sum_dp, sum_dn, sum_pn, sum_tl, nonzero_count
_MAX_TILE_ROWS = 32768


def _round_up(x: int, m: int) -> int:
    return (x + m - 1) // m * m


def _row_align(itemsize: int) -> int:
    # Native sublane packing: f32 -> 8, bf16 -> 16, int8/fp8 -> 32.
    return {4: 8, 2: 16, 1: 32}.get(itemsize, 8)


def _vmem_capacity_bytes() -> int:
    try:
        cap = int(getattr(pltpu.get_tpu_info(), "vmem_capacity_bytes", 0))
        if cap > 0:
            return cap
    except Exception:
        pass
    return 64 * 1024 * 1024        # conservative default (v7x-sized part)


def _num_tensorcores() -> int:
    """Best-effort TensorCores-per-chip (2 only on v7x-class parts)."""
    try:
        info = pltpu.get_tpu_info()
        for name in ("num_cores", "num_tensorcores", "tensorcore_count",
                     "cores_per_chip"):
            v = getattr(info, name, None)
            if isinstance(v, int) and v >= 1:
                return min(int(v), 2)
    except Exception:
        pass
    try:
        kind = jax.devices()[0].device_kind.lower()
        if "v7" in kind:
            return 2
    except Exception:
        pass
    return 1


def _choose_tile_rows(n: int, d: int, arrays):
    """Pick (tile_rows, vmem_limit_bytes) from the chip's VMEM capacity."""
    cap = _vmem_capacity_bytes()
    vmem_limit = max(min(3 * cap // 4, cap - (8 << 20)), 32 << 20)
    budget = vmem_limit // 2                       # leave room for out/acc/etc.
    align = max(_row_align(jnp.dtype(a.dtype).itemsize) for a in arrays)
    # Double-buffered DMA tiles per input + f32 compute copies / temporaries.
    per_row = sum(2 * d * jnp.dtype(a.dtype).itemsize for a in arrays)
    per_row += (len(arrays) + 2) * d * 4
    rows = max(align, (budget // max(per_row, 1)) // align * align)
    rows = min(rows, _MAX_TILE_ROWS, _round_up(n, align))
    return int(rows), int(vmem_limit)


def _stats_kernel(*refs, margin, n_rows, tile_rows, tiles_per_chunk,
                  grid_ndim, has_center, needs_mask):
    if has_center:
        a_ref, p_ref, n_ref, c_ref, out_ref, acc_ref = refs
    else:
        a_ref, p_ref, n_ref, out_ref, acc_ref = refs
        c_ref = None

    if grid_ndim == 1:
        t = pl.program_id(0)
        lin_tile = t
        last_t = pl.num_programs(0) - 1
    else:
        t = pl.program_id(1)
        lin_tile = pl.program_id(0) * tiles_per_chunk + t
        last_t = pl.num_programs(1) - 1

    @pl.when(t == 0)
    def _init():
        acc_ref[...] = jnp.zeros_like(acc_ref)

    a = a_ref[...].astype(jnp.float32)
    p = p_ref[...].astype(jnp.float32)
    ng = n_ref[...].astype(jnp.float32)
    cm = c_ref[...].astype(jnp.float32) if has_center else None

    if needs_mask:
        # Zero rows past n: every squared difference of a zeroed row is exactly
        # 0, so only the hinge's "+margin" needs an extra (cheap, column) mask.
        row = (lin_tile * tile_rows
               + jax.lax.broadcasted_iota(jnp.int32, (tile_rows, 1), 0))
        valid = row < n_rows                                    # (tile_rows, 1)
        a = jnp.where(valid, a, 0.0)
        p = jnp.where(valid, p, 0.0)
        ng = jnp.where(valid, ng, 0.0)
        if has_center:
            cm = jnp.where(valid, cm, 0.0)

    d_ap = a - p
    d_an = a - ng
    d_pn = p - ng
    sq_ap = d_ap * d_ap
    sq_an = d_an * d_an
    sq_pn = d_pn * d_pn

    # Single per-row cross-lane reduction: dp - dn is all the hinge needs.
    ddiff = jnp.sum(sq_ap - sq_an, axis=1, keepdims=True)       # (tile_rows, 1)
    tl = jnp.maximum(ddiff + margin, 0.0)
    if needs_mask:
        tl = jnp.where(valid, tl, 0.0)
    nz = (tl > 0.0).astype(jnp.float32)

    # Full-tile sums: dense VPU adds + one final cross-lane reduce each
    # (no per-row XLU passes for dp / dn / dpn / center).
    stats = [jnp.sum(sq_ap), jnp.sum(sq_an), jnp.sum(sq_pn),
             jnp.sum(tl), jnp.sum(nz)]
    if has_center:
        d_ac = a - cm
        stats.append(jnp.sum(d_ac * d_ac))

    # Pack scalar k into sublane k of one (8,128) vreg; single accumulator add.
    sub = jax.lax.broadcasted_iota(jnp.int32, (8, 128), 0)
    packed = jnp.zeros((8, 128), jnp.float32)
    for k, v in enumerate(stats):
        packed = jnp.where(sub == k, v, packed)
    acc_ref[...] += packed

    @pl.when(t == last_t)
    def _finalize():
        out_ref[...] = acc_ref[...]                              # lane-dense store


def _run_stats(arrays, *, margin, has_center, tile_rows=None):
    """Launch the streaming stats kernel; returns the (num_stats,) f32 sums."""
    n, d = arrays[0].shape
    auto_rows, vmem_limit = _choose_tile_rows(n, d, arrays)
    if tile_rows is None:
        tile_rows = auto_rows
    align = max(_row_align(jnp.dtype(a.dtype).itemsize) for a in arrays)

    num_chunks = _num_tensorcores()
    total_tiles = int(pl.cdiv(n, tile_rows))
    num_chunks = min(num_chunks, total_tiles)
    if num_chunks > 1 and total_tiles % num_chunks != 0:
        # Shrink the tile slightly so the tile count splits EXACTLY across
        # TensorCores (never re-DMA a clamped duplicate tile); otherwise give
        # up on the chunk split entirely.
        tiles_target = _round_up(total_tiles, num_chunks)
        cand = max(align, _round_up(int(pl.cdiv(n, tiles_target)), align))
        if int(pl.cdiv(n, cand)) % num_chunks == 0:
            tile_rows = cand
            total_tiles = int(pl.cdiv(n, tile_rows))
        else:
            num_chunks = 1
    tiles_per_chunk = total_tiles // max(num_chunks, 1)
    needs_mask = (n % tile_rows) != 0
    grid_ndim = 1 if num_chunks == 1 else 2

    if grid_ndim == 1:
        grid = (total_tiles,)
        in_specs = [pl.BlockSpec((tile_rows, d), lambda t: (t, 0))
                    for _ in arrays]
        out_specs = pl.BlockSpec((8, 128), lambda t: (0, 0))
        dim_sem = ("arbitrary",)
    else:
        tpc = tiles_per_chunk
        grid = (num_chunks, tiles_per_chunk)
        in_specs = [pl.BlockSpec((tile_rows, d), lambda c, t: (c * tpc + t, 0))
                    for _ in arrays]
        out_specs = pl.BlockSpec((8, 128), lambda c, t: (c, 0))
        dim_sem = ("parallel", "arbitrary")

    kernel = functools.partial(
        _stats_kernel, margin=float(margin), n_rows=n, tile_rows=tile_rows,
        tiles_per_chunk=tiles_per_chunk, grid_ndim=grid_ndim,
        has_center=has_center, needs_mask=needs_mask)

    in_bytes = sum(int(a.size) * jnp.dtype(a.dtype).itemsize for a in arrays)
    cost = pl.CostEstimate(
        flops=int((9 + (3 if has_center else 0)) * n * d),
        transcendentals=0,
        bytes_accessed=int(in_bytes + num_chunks * 8 * 128 * 4),
    )

    out = pl.pallas_call(
        kernel,
        out_shape=jax.ShapeDtypeStruct((num_chunks * 8, 128), jnp.float32),
        grid_spec=pltpu.PrefetchScalarGridSpec(
            num_scalar_prefetch=0,
            grid=grid,
            in_specs=in_specs,
            out_specs=out_specs,
            scratch_shapes=[pltpu.VMEM((8, 128), jnp.float32)],
        ),
        compiler_params=pltpu.CompilerParams(
            dimension_semantics=dim_sem,
            vmem_limit_bytes=vmem_limit,
        ),
        cost_estimate=cost,
    )(*arrays)

    num_stats = _BASE_STATS + (1 if has_center else 0)
    stats_per_chunk = out.reshape(num_chunks, 8, 128)[:, :num_stats, 0]
    return jnp.sum(stats_per_chunk, axis=0)


def triplet_loss_v2(anchor, positive, negative, targets=None, is_semi_hard=False,
                    size_average=None, means=None, *, margin=1.0,
                    use_pallas=None, tile_rows=None):
    """JAX/Pallas equivalent of TripletLossV2.forward."""
    assert anchor.ndim == 2 and anchor.shape == positive.shape == negative.shape
    n, d = anchor.shape
    if use_pallas is None:
        # Tiny problems: pallas_call launch overhead dominates; let XLA fuse.
        use_pallas = n * d >= 65536

    has_center = means is not None
    if has_center:
        assert targets is not None
        # Gather stays in XLA; keep it in float32 (do NOT downcast to bf16).
        gathered = means[targets].astype(jnp.float32)

    if use_pallas:
        arrays = (anchor, positive, negative) + ((gathered,) if has_center else ())
        stats = _run_stats(arrays, margin=margin, has_center=has_center,
                           tile_rows=tile_rows)
    else:
        a = anchor.astype(jnp.float32)
        p = positive.astype(jnp.float32)
        ng = negative.astype(jnp.float32)
        dp = jnp.sum((a - p) ** 2, axis=1)
        dn = jnp.sum((a - ng) ** 2, axis=1)
        dpn = jnp.sum((p - ng) ** 2, axis=1)
        tl = jnp.maximum(dp - dn + margin, 0.0)
        vals = [dp.sum(), dn.sum(), dpn.sum(), tl.sum(),
                jnp.sum(tl > 0.0).astype(jnp.float32)]
        if has_center:
            diff = a - gathered
            vals.append(jnp.sum(diff * diff))
        stats = jnp.stack(vals)

    sum_dp, sum_dn, sum_pn, sum_tl, nz = (stats[i] for i in range(_BASE_STATS))
    inv_n = jnp.float32(1.0 / n)

    # NOTE: the PyTorch reference's isSemiHard branch discards the result of
    # index_select, so it never changes the loss (kept as a faithful no-op);
    # `size_average` is likewise unused by the reference.
    #
    # nz == 0 branch: the reference returns tl.mean(), but relu guarantees all
    # tl are exactly zero in that case, so the mean is 0.0 — do not "fix" this.
    triplet_loss = jnp.where(nz > 0, sum_tl / jnp.maximum(nz, 1.0),
                             jnp.float32(0.0))
    pairwise_term = jnp.maximum((sum_dp - sum_dn - sum_pn) * inv_n, 0.0)
    dist_pos_mean = sum_dp * inv_n
    dist_neg_mean = sum_dn * inv_n

    center_loss = jnp.float32(0.0)
    if has_center:
        center_loss = stats[_BASE_STATS] * inv_n

    # PyTorch returns .item() floats for the last two; they stay JAX scalars here.
    return triplet_loss, pairwise_term, center_loss, dist_pos_mean, dist_neg_mean


def _reference(anchor, positive, negative, targets, means, margin):
    a, p, ng = (x.astype(jnp.float32) for x in (anchor, positive, negative))
    dp = jnp.sum((a - p) ** 2, axis=1)
    dn = jnp.sum((a - ng) ** 2, axis=1)
    dpn = jnp.sum((p - ng) ** 2, axis=1)
    tl = jnp.maximum(dp - dn + margin, 0.0)
    nz = jnp.sum(tl > 0.0)
    trip = jnp.where(nz > 0,
                     jnp.sum(tl) / jnp.maximum(nz, 1).astype(jnp.float32),
                     jnp.mean(tl))
    pw = jnp.maximum(jnp.mean(dp - dn - dpn), 0.0)
    cl = jnp.float32(0.0)
    if means is not None:
        diff = a - means[targets].astype(jnp.float32)
        cl = jnp.mean(jnp.sum(diff * diff, axis=1))
    return trip, pw, cl, jnp.mean(dp), jnp.mean(dn)


if __name__ == "__main__":
    key = jax.random.PRNGKey(0)
    ka, kp, kn, km, kt, k2a, k2p, k2n = jax.random.split(key, 8)

    # Small shapes implied by the forward: a batch of embedding triplets.
    N, D, C = 8, 32, 4
    margin = 0.5
    anchor = jax.random.normal(ka, (N, D), jnp.float32)
    positive = jax.random.normal(kp, (N, D), jnp.float32)
    negative = jax.random.normal(kn, (N, D), jnp.float32)
    means = jax.random.normal(km, (C, D), jnp.float32)
    targets = jax.random.randint(kt, (N,), 0, C)

    got = triplet_loss_v2(anchor, positive, negative, targets,
                          is_semi_hard=False, means=means, margin=margin,
                          use_pallas=True)
    got = jax.block_until_ready(got)
    want = _reference(anchor, positive, negative, targets, means, margin)
    for g, w in zip(got, want):
        assert jnp.allclose(g, w, rtol=1e-4, atol=1e-4), (g, w)

    # Second check: non-divisible row count + forced small tile exercises the
    # multi-tile grid and the masked partial-tile path.
    N2 = 40
    anchor2 = jax.random.normal(k2a, (N2, D), jnp.float32)
    positive2 = jax.random.normal(k2p, (N2, D), jnp.float32)
    negative2 = jax.random.normal(k2n, (N2, D), jnp.float32)
    got2 = triplet_loss_v2(anchor2, positive2, negative2, margin=margin,
                           use_pallas=True, tile_rows=16)
    got2 = jax.block_until_ready(got2)
    want2 = _reference(anchor2, positive2, negative2, None, None, margin)
    for g, w in zip(got2, want2):
        assert jnp.allclose(g, w, rtol=1e-4, atol=1e-4), (g, w)

    print("KERNEL_OK")
</pallas_src>

<mosaic_0001>
module attributes {stable_mosaic.version = 11 : i64} {
  func.func @_stats_kernel(%arg0: i32, %arg1: memref<8x32xf32, #tpu.memory_space<vmem>>, %arg2: memref<8x32xf32, #tpu.memory_space<vmem>>, %arg3: memref<8x32xf32, #tpu.memory_space<vmem>>, %arg4: memref<8x32xf32, #tpu.memory_space<vmem>>, %arg5: memref<8x128xf32, #tpu.memory_space<vmem>>, %arg6: memref<8x128xf32, #tpu.memory_space<vmem>>) attributes {dimension_semantics = [#tpu.dimension_semantics<arbitrary>], iteration_bounds = array<i64: 1>, scalar_prefetch = 0 : i64, scratch_operands = 1 : i64, tpu.core_type = #tpu.core_type<tc>, window_params = [{transform_indices = @transform_0, window_bounds = array<i64: 8, 32>}, {transform_indices = @transform_1, window_bounds = array<i64: 8, 32>}, {transform_indices = @transform_2, window_bounds = array<i64: 8, 32>}, {transform_indices = @transform_3, window_bounds = array<i64: 8, 32>}, {pipeline_mode = #tpu.pipeline_mode<synchronous>, transform_indices = @transform_4, window_bounds = array<i64: 8, 128>}]} {
    %c0_i32 = arith.constant 0 : i32
    %0 = arith.cmpi eq, %arg0, %c0_i32 : i32
    %1 = arith.extui %0 : i1 to i32
    %c0_i32_0 = arith.constant 0 : i32
    %2 = arith.cmpi ne, %1, %c0_i32_0 : i32
    scf.if %2 {
      %cst_25 = arith.constant 0.000000e+00 : f32
      %82 = vector.broadcast %cst_25 : f32 to vector<8x128xf32>
      %c0_26 = arith.constant 0 : index
      %c0_27 = arith.constant 0 : index
      %83 = vector.load %arg6[%c0_26, %c0_27] : memref<8x128xf32, #tpu.memory_space<vmem>>, vector<8x128xf32>
      tpu.vector_store %arg6[%c0_26, %c0_27], %82 {strides = array<i32>} : memref<8x128xf32, #tpu.memory_space<vmem>>, vector<8x128xf32>,
    } else {
    }
    %c0 = arith.constant 0 : index
    %c0_1 = arith.constant 0 : index
    %3 = vector.load %arg1[%c0, %c0_1] : memref<8x32xf32, #tpu.memory_space<vmem>>, vector<8x32xf32>
    %c0_2 = arith.constant 0 : index
    %c0_3 = arith.constant 0 : index
    %4 = vector.load %arg2[%c0_2, %c0_3] : memref<8x32xf32, #tpu.memory_space<vmem>>, vector<8x32xf32>
    %c0_4 = arith.constant 0 : index
    %c0_5 = arith.constant 0 : index
    %5 = vector.load %arg3[%c0_4, %c0_5] : memref<8x32xf32, #tpu.memory_space<vmem>>, vector<8x32xf32>
    %c0_6 = arith.constant 0 : index
    %c0_7 = arith.constant 0 : index
    %6 = vector.load %arg4[%c0_6, %c0_7] : memref<8x32xf32, #tpu.memory_space<vmem>>, vector<8x32xf32>
    %7 = arith.subf %3, %4 : vector<8x32xf32>
    %8 = arith.subf %3, %5 : vector<8x32xf32>
    %9 = arith.subf %4, %5 : vector<8x32xf32>
    %10 = arith.mulf %7, %7 : vector<8x32xf32>
    %11 = arith.mulf %8, %8 : vector<8x32xf32>
    %12 = arith.mulf %9, %9 : vector<8x32xf32>
    %13 = arith.subf %10, %11 : vector<8x32xf32>
    %cst = arith.constant dense<0.000000e+00> : vector<8xf32>
    %14 = vector.multi_reduction <add>, %13, %cst [1] : vector<8x32xf32> to vector<8xf32>
    %15 = vector.shape_cast %14 : vector<8xf32> to vector<8x1xf32>
    %cst_8 = arith.constant 5.000000e-01 : f32
    %16 = vector.broadcast %cst_8 : f32 to vector<8x1xf32>
    %17 = arith.addf %15, %16 : vector<8x1xf32>
    %cst_9 = arith.constant 0.000000e+00 : f32
    %18 = vector.broadcast %cst_9 : f32 to vector<8x1xf32>
    %19 = arith.maximumf %17, %18 : vector<8x1xf32>
    %cst_10 = arith.constant 0.000000e+00 : f32
    %20 = vector.broadcast %cst_10 : f32 to vector<8x1xf32>
    %21 = arith.cmpf ogt, %19, %20 : vector<8x1xf32>
    %22 = arith.extui %21 : vector<8x1xi1> to vector<8x1xi32>
    %23 = arith.sitofp %22 : vector<8x1xi32> to vector<8x1xf32>
    %24 = vector.shape_cast %10 : vector<8x32xf32> to vector<1x8x32xf32>
    %cst_11 = arith.constant dense<0.000000e+00> : vector<1xf32>
    %25 = vector.multi_reduction <add>, %24, %cst_11 [1, 2] : vector<1x8x32xf32> to vector<1xf32>
    %26 = vector.shape_cast %25 : vector<1xf32> to vector<1x1x1xf32>
    %27 = vector.extract %26[0, 0, 0] : f32 from vector<1x1x1xf32>
    %28 = vector.shape_cast %11 : vector<8x32xf32> to vector<1x8x32xf32>
    %cst_12 = arith.constant dense<0.000000e+00> : vector<1xf32>
    %29 = vector.multi_reduction <add>, %28, %cst_12 [1, 2] : vector<1x8x32xf32> to vector<1xf32>
    %30 = vector.shape_cast %29 : vector<1xf32> to vector<1x1x1xf32>
    %31 = vector.extract %30[0, 0, 0] : f32 from vector<1x1x1xf32>
    %32 = vector.shape_cast %12 : vector<8x32xf32> to vector<1x8x32xf32>
    %cst_13 = arith.constant dense<0.000000e+00> : vector<1xf32>
    %33 = vector.multi_reduction <add>, %32, %cst_13 [1, 2] : vector<1x8x32xf32> to vector<1xf32>
    %34 = vector.shape_cast %33 : vector<1xf32> to vector<1x1x1xf32>
    %35 = vector.extract %34[0, 0, 0] : f32 from vector<1x1x1xf32>
    %36 = vector.shape_cast %19 : vector<8x1xf32> to vector<1x8x1xf32>
    %cst_14 = arith.constant dense<0.000000e+00> : vector<1xf32>
    %37 = vector.multi_reduction <add>, %36, %cst_14 [1, 2] : vector<1x8x1xf32> to vector<1xf32>
    %38 = vector.shape_cast %37 : vector<1xf32> to vector<1x1x1xf32>
    %39 = vector.extract %38[0, 0, 0] : f32 from vector<1x1x1xf32>
    %40 = vector.shape_cast %23 : vector<8x1xf32> to vector<1x8x1xf32>
    %cst_15 = arith.constant dense<0.000000e+00> : vector<1xf32>
    %41 = vector.multi_reduction <add>, %40, %cst_15 [1, 2] : vector<1x8x1xf32> to vector<1xf32>
    %42 = vector.shape_cast %41 : vector<1xf32> to vector<1x1x1xf32>
    %43 = vector.extract %42[0, 0, 0] : f32 from vector<1x1x1xf32>
    %44 = arith.subf %3, %6 : vector<8x32xf32>
    %45 = arith.mulf %44, %44 : vector<8x32xf32>
    %46 = vector.shape_cast %45 : vector<8x32xf32> to vector<1x8x32xf32>
    %cst_16 = arith.constant dense<0.000000e+00> : vector<1xf32>
    %47 = vector.multi_reduction <add>, %46, %cst_16 [1, 2] : vector<1x8x32xf32> to vector<1xf32>
    %48 = vector.shape_cast %47 : vector<1xf32> to vector<1x1x1xf32>
    %49 = vector.extract %48[0, 0, 0] : f32 from vector<1x1x1xf32>
    %50 = tpu.iota {dimensions = array<i32: 0>} : vector<8x128xi32>
    %cst_17 = arith.constant 0.000000e+00 : f32
    %51 = vector.broadcast %cst_17 : f32 to vector<8x128xf32>
    %c0_i32_18 = arith.constant 0 : i32
    %52 = vector.broadcast %c0_i32_18 : i32 to vector<8x128xi32>
    %53 = arith.cmpi eq, %50, %52 : vector<8x128xi32>
    %54 = vector.broadcast %27 : f32 to vector<8x128xf32>
    %55 = arith.select %53, %54, %51 : vector<8x128xi1>, vector<8x128xf32>
    %c1_i32 = arith.constant 1 : i32
    %56 = vector.broadcast %c1_i32 : i32 to vector<8x128xi32>
    %57 = arith.cmpi eq, %50, %56 : vector<8x128xi32>
    %58 = vector.broadcast %31 : f32 to vector<8x128xf32>
    %59 = arith.select %57, %58, %55 : vector<8x128xi1>, vector<8x128xf32>
    %c2_i32 = arith.constant 2 : i32
    %60 = vector.broadcast %c2_i32 : i32 to vector<8x128xi32>
    %61 = arith.cmpi eq, %50, %60 : vector<8x128xi32>
    %62 = vector.broadcast %35 : f32 to vector<8x128xf32>
    %63 = arith.select %61, %62, %59 : vector<8x128xi1>, vector<8x128xf32>
    %c3_i32 = arith.constant 3 : i32
    %64 = vector.broadcast %c3_i32 : i32 to vector<8x128xi32>
    %65 = arith.cmpi eq, %50, %64 : vector<8x128xi32>
    %66 = vector.broadcast %39 : f32 to vector<8x128xf32>
    %67 = arith.select %65, %66, %63 : vector<8x128xi1>, vector<8x128xf32>
    %c4_i32 = arith.constant 4 : i32
    %68 = vector.broadcast %c4_i32 : i32 to vector<8x128xi32>
    %69 = arith.cmpi eq, %50, %68 : vector<8x128xi32>
    %70 = vector.broadcast %43 : f32 to vector<8x128xf32>
    %71 = arith.select %69, %70, %67 : vector<8x128xi1>, vector<8x128xf32>
    %c5_i32 = arith.constant 5 : i32
    %72 = vector.broadcast %c5_i32 : i32 to vector<8x128xi32>
    %73 = arith.cmpi eq, %50, %72 : vector<8x128xi32>
    %74 = vector.broadcast %49 : f32 to vector<8x128xf32>
    %75 = arith.select %73, %74, %71 : vector<8x128xi1>, vector<8x128xf32>
    %c0_19 = arith.constant 0 : index
    %c0_20 = arith.constant 0 : index
    %76 = vector.load %arg6[%c0_19, %c0_20] : memref<8x128xf32, #tpu.memory_space<vmem>>, vector<8x128xf32>
    %77 = arith.addf %76, %75 : vector<8x128xf32>
    %c0_21 = arith.constant 0 : index
    %c0_22 = arith.constant 0 : index
    %78 = vector.load %arg6[%c0_21, %c0_22] : memref<8x128xf32, #tpu.memory_space<vmem>>, vector<8x128xf32>
    tpu.vector_store %arg6[%c0_21, %c0_22], %77 {strides = array<i32>} : memref<8x128xf32, #tpu.memory_space<vmem>>, vector<8x128xf32>,
    %c0_i32_23 = arith.constant 0 : i32
    %79 = arith.cmpi eq, %arg0, %c0_i32_23 : i32
    %80 = arith.extui %79 : i1 to i32
    %c0_i32_24 = arith.constant 0 : i32
    %81 = arith.cmpi ne, %80, %c0_i32_24 : i32
    scf.if %81 {
      %c0_25 = arith.constant 0 : index
      %c0_26 = arith.constant 0 : index
      %82 = vector.load %arg6[%c0_25, %c0_26] : memref<8x128xf32, #tpu.memory_space<vmem>>, vector<8x128xf32>
      %c0_27 = arith.constant 0 : index
      %c0_28 = arith.constant 0 : index
      %83 = vector.load %arg5[%c0_27, %c0_28] : memref<8x128xf32, #tpu.memory_space<vmem>>, vector<8x128xf32>
      tpu.vector_store %arg5[%c0_27, %c0_28], %82 {strides = array<i32>} : memref<8x128xf32, #tpu.memory_space<vmem>>, vector<8x128xf32>,
    } else {
    }
    return
  }
  func.func @transform_0(%arg0: i32) -> (i32, i32) {
    %c0_i32 = arith.constant 0 : i32
    %c0_i32_0 = arith.constant 0 : i32
    return %arg0, %c0_i32 : i32, i32
  }
  func.func @transform_1(%arg0: i32) -> (i32, i32) {
    %c0_i32 = arith.constant 0 : i32
    %c0_i32_0 = arith.constant 0 : i32
    return %arg0, %c0_i32 : i32, i32
  }
  func.func @transform_2(%arg0: i32) -> (i32, i32) {
    %c0_i32 = arith.constant 0 : i32
    %c0_i32_0 = arith.constant 0 : i32
    return %arg0, %c0_i32 : i32, i32
  }
  func.func @transform_3(%arg0: i32) -> (i32, i32) {
    %c0_i32 = arith.constant 0 : i32
    %c0_i32_0 = arith.constant 0 : i32
    return %arg0, %c0_i32 : i32, i32
  }
  func.func @transform_4(%arg0: i32) -> (i32, i32) {
    %c0_i32 = arith.constant 0 : i32
    %c0_i32_0 = arith.constant 0 : i32
    %c0_i32_1 = arith.constant 0 : i32
    return %c0_i32, %c0_i32_0 : i32, i32
  }
}

</mosaic_0001>

<llo_original>
// kernel: tpu_custom_call.1
$region0: #{tpu_custom_call.1}
  #allocation0 [shape = 'u32[]', space=smem, size = 0x4, offset = 0x4, fixed_abs, tag = 'smem constant byte address 0x4 - core index']
  #allocation1 [shape = 'u32[72,128]{1,0:T(1,128)}', space=vmem, size = 0x9000, scoped, tag = 'internal scratch']
  #allocation2 [shape = 'f32[8,128]{1,0:T(8,128)}', space=vmem, size = 0x1000, scoped, tag = 'scratch operand']
  %s0 = inlined_call_operand.hbm [shape: f32[8,32], index: 0, kind: input, shape index: {}]
  %s1 = inlined_call_operand.hbm [shape: f32[8,32], index: 1, kind: input, shape index: {}]
  %s2 = inlined_call_operand.hbm [shape: f32[8,32], index: 2, kind: input, shape index: {}]
  %s3 = inlined_call_operand.hbm [shape: f32[8,32], index: 3, kind: input, shape index: {}]
  %s4 = inlined_call_operand.hbm [shape: f32[8,128], index: 4, kind: output, shape index: {}]
  %s5 = sld [smem:[#allocation0]]
  $region50: #{tpu_custom_call.1} parent=0
    _
  %s7 = ssub.s32 1, %s5
  %s8 = scalar_select 0, %s7, %s5
  $region1: #{tpu_custom_call.1} parent=0
    #allocation3 [shape = 'u8[4096]{0}', space=vmem, size = 0x1000, scoped, tag = 'input window, operand 0, single buffered']
    #allocation4 [shape = 's32[1]{0}', space=sflag, size = 0x4, scoped, tag = 'scoped memory for tpu_custom_call.1']
    #allocation5 [shape = 's32[1]{0}', space=sflag, size = 0x4, scoped, tag = 'scoped memory for tpu_custom_call.1']
    #allocation6 [shape = 'u8[4096]{0}', space=vmem, size = 0x1000, scoped, tag = 'input window, operand 1, single buffered']
    #allocation7 [shape = 's32[1]{0}', space=sflag, size = 0x4, scoped, tag = 'scoped memory for tpu_custom_call.1']
    #allocation8 [shape = 'u8[4096]{0}', space=vmem, size = 0x1000, scoped, tag = 'input window, operand 2, single buffered']
    #allocation9 [shape = 'u8[4096]{0}', space=vmem, size = 0x1000, scoped, tag = 'input window, operand 3, single buffered']
    #allocation10 [shape = 's32[1]{0}', space=sflag, size = 0x4, scoped, tag = 'scoped memory for tpu_custom_call.1']
    #allocation11 [shape = 'u8[4096]{0}', space=vmem, size = 0x1000, scoped, tag = 'output window, operand 0, single buffered']
    %9 = vsyncpa [#allocation4], 0
    %10 = vsyncpa [#allocation7], 0
    %11 = vsyncpa [#allocation10], 0
    %12 = vsyncpa [#allocation5], 0
    // Predicated region
    $region2: #{tpu_custom_call.1} parent=1 // pred_check
      _
    $region3: #{tpu_custom_call.1} parent=1 // pred_check_branch
      %14 = sbr.rel (0) target = $region5
    $region4: #{tpu_custom_call.1} parent=1 // pred_region
      %16 = vsyncadd [#allocation4], 0
      %s18 = sshll.u32 %s0, 4
      %s19 = int_to_ptr.hbm [resolvable:$true] %s18
      %s20 = sshll.u32 [#allocation3], 4
      %s21 = int_to_ptr.vmem [resolvable:$true] %s20
      %23 = dma.hbm_to_vmem [thread:$0]  %s19, 128, %s21, [#allocation4]
    $region5: #{tpu_custom_call.1} parent=1 // pred_fallthru
      _
    // Predicated region
    $region6: #{tpu_custom_call.1} parent=1 // pred_check
      _
    $region7: #{tpu_custom_call.1} parent=1 // pred_check_branch
      %25 = sbr.rel (0) target = $region9
    $region8: #{tpu_custom_call.1} parent=1 // pred_region
      %27 = vsyncadd [#allocation7], 0
      %s29 = sshll.u32 %s1, 4
      %s30 = int_to_ptr.hbm [resolvable:$true] %s29
      %s31 = sshll.u32 [#allocation6], 4
      %s32 = int_to_ptr.vmem [resolvable:$true] %s31
      %34 = dma.hbm_to_vmem [thread:$0]  %s30, 128, %s32, [#allocation7]
    $region9: #{tpu_custom_call.1} parent=1 // pred_fallthru
      _
    // Predicated region
    $region10: #{tpu_custom_call.1} parent=1 // pred_check
      _
    $region11: #{tpu_custom_call.1} parent=1 // pred_check_branch
      %36 = sbr.rel (0) target = $region13
    $region12: #{tpu_custom_call.1} parent=1 // pred_region
      %38 = vsyncadd [#allocation7], 0
      %s40 = sshll.u32 %s2, 4
      %s41 = int_to_ptr.hbm [resolvable:$true] %s40
      %s42 = sshll.u32 [#allocation8], 4
      %s43 = int_to_ptr.vmem [resolvable:$true] %s42
      %45 = dma.hbm_to_vmem [thread:$0]  %s41, 128, %s43, [#allocation7]
    $region13: #{tpu_custom_call.1} parent=1 // pred_fallthru
      _
    // Predicated region
    $region14: #{tpu_custom_call.1} parent=1 // pred_check
      _
    $region15: #{tpu_custom_call.1} parent=1 // pred_check_branch
      %47 = sbr.rel (0) target = $region17
    $region16: #{tpu_custom_call.1} parent=1 // pred_region
      %49 = vsyncadd [#allocation10], 0
      %s51 = sshll.u32 %s3, 4
      %s52 = int_to_ptr.hbm [resolvable:$true] %s51
      %s53 = sshll.u32 [#allocation9], 4
      %s54 = int_to_ptr.vmem [resolvable:$true] %s53
      %56 = dma.hbm_to_vmem [thread:$0]  %s52, 128, %s54, [#allocation10]
    $region17: #{tpu_custom_call.1} parent=1 // pred_fallthru
      _
    // Predicated region
    $region18: #{tpu_custom_call.1} parent=1 // pred_check
      _
    $region19: #{tpu_custom_call.1} parent=1 // pred_check_branch
      %58 = sbr.rel (0) target = $region21
    $region20: #{tpu_custom_call.1} parent=1 // pred_region
      %60 = dma.done [#allocation4], 128
    $region21: #{tpu_custom_call.1} parent=1 // pred_fallthru
      _
    // Predicated region
    $region22: #{tpu_custom_call.1} parent=1 // pred_check
      _
    $region23: #{tpu_custom_call.1} parent=1 // pred_check_branch
      %62 = sbr.rel (0) target = $region25
    $region24: #{tpu_custom_call.1} parent=1 // pred_region
      %64 = dma.done [#allocation7], 128
    $region25: #{tpu_custom_call.1} parent=1 // pred_fallthru
      _
    // Predicated region
    $region26: #{tpu_custom_call.1} parent=1 // pred_check
      _
    $region27: #{tpu_custom_call.1} parent=1 // pred_check_branch
      %66 = sbr.rel (0) target = $region29
    $region28: #{tpu_custom_call.1} parent=1 // pred_region
      %68 = dma.done [#allocation7], 128
    $region29: #{tpu_custom_call.1} parent=1 // pred_fallthru
      _
    // Predicated region
    $region30: #{tpu_custom_call.1} parent=1 // pred_check
      _
    $region31: #{tpu_custom_call.1} parent=1 // pred_check_branch
      %70 = sbr.rel (0) target = $region33
    $region32: #{tpu_custom_call.1} parent=1 // pred_region
      %72 = dma.done [#allocation10], 128
    $region33: #{tpu_custom_call.1} parent=1 // pred_fallthru
      _
    %p73 = scmp.eq.s32.totalorder 0, 0
    // Predicated region
    $region34: #{tpu_custom_call.1} parent=1 // pred_check
      %p74 = pneg %p73
    $region35: #{tpu_custom_call.1} parent=1 // pred_check_branch
      %76 = sbr.rel (%p74) target = $region37
    $region36: #{tpu_custom_call.1} parent=1 // pred_region
      %77 = vst [vmem:[#allocation2] sm:$0xff] 0.0
    $region37: #{tpu_custom_call.1} parent=1 // pred_fallthru
      _
    %v78 = vld [vmem:[#allocation3] sm:$0xff]
    %v79 = vld [vmem:[#allocation6] sm:$0xff]
    %v80 = vld [vmem:[#allocation8] sm:$0xff]
    %v81 = vld [vmem:[#allocation9] sm:$0xff]
    %v82 = vsub.f32 %v78, %v79
    %v83 = vsub.f32 %v78, %v80
    %v84 = vsub.f32 %v79, %v80
    %v85 = vmul.f32 %v82, %v82
    %v86 = vmul.f32 %v83, %v83
    %v87 = vmul.f32 %v84, %v84
    %v88 = vsub.f32 %v85, %v86
    %vm89 = vcmask 261120
    %v90 = vsel %vm89, %v88, 0.0
    %91 = vadd.xlane.f32.xlu0 %v90
    %v92 = vpop.xlane.xlu0 %91
    %v93 = vadd.f32 %v92, 0.5
    %v94 = vmax.f32 %v93, 0.0
    %vm95 = vcmp.gt.f32.partialorder %v94, 0.0
    %v96 = vsel %vm95, 1, 0
    %v97 = vcvt.s32.f32 %v96
    %v98 = vsel %vm89, %v85, 0.0
    %99 = vadd.xlane.f32.xlu0 %v98
    %v100 = vpop.xlane.xlu0 %99
    %v101 = vrot.slane %v100, 4
    %v102 = vadd.f32 %v100, %v101
    %v103 = vrot.slane %v102, 2
    %v104 = vadd.f32 %v102, %v103
    %v105 = vrot.slane %v104, 1
    %v106 = vadd.f32 %v104, %v105
    %s107 = vtos %v106
    %v108 = vsel %vm89, %v86, 0.0
    %109 = vadd.xlane.f32.xlu0 %v108
    %v110 = vpop.xlane.xlu0 %109
    %v111 = vrot.slane %v110, 4
    %v112 = vadd.f32 %v110, %v111
    %v113 = vrot.slane %v112, 2
    %v114 = vadd.f32 %v112, %v113
    %v115 = vrot.slane %v114, 1
    %v116 = vadd.f32 %v114, %v115
    %s117 = vtos %v116
    %v118 = vsel %vm89, %v87, 0.0
    %119 = vadd.xlane.f32.xlu0 %v118
    %v120 = vpop.xlane.xlu0 %119
    %v121 = vrot.slane %v120, 4
    %v122 = vadd.f32 %v120, %v121
    %v123 = vrot.slane %v122, 2
    %v124 = vadd.f32 %v122, %v123
    %v125 = vrot.slane %v124, 1
    %v126 = vadd.f32 %v124, %v125
    %s127 = vtos %v126
    %vm128 = vcmask 7168
    %v129 = vsel %vm128, %v94, 0.0
    %130 = vadd.xlane.f32.xlu0 %v129
    %v131 = vpop.xlane.xlu0 %130
    %v132 = vrot.slane %v131, 4
    %v133 = vadd.f32 %v131, %v132
    %v134 = vrot.slane %v133, 2
    %v135 = vadd.f32 %v133, %v134
    %v136 = vrot.slane %v135, 1
    %v137 = vadd.f32 %v135, %v136
    %s138 = vtos %v137
    %v139 = vsel %vm128, %v97, 0.0
    %140 = vadd.xlane.f32.xlu0 %v139
    %v141 = vpop.xlane.xlu0 %140
    %v142 = vrot.slane %v141, 4
    %v143 = vadd.f32 %v141, %v142
    %v144 = vrot.slane %v143, 2
    %v145 = vadd.f32 %v143, %v144
    %v146 = vrot.slane %v145, 1
    %v147 = vadd.f32 %v145, %v146
    %s148 = vtos %v147
    %v149 = vsub.f32 %v78, %v81
    %v150 = vmul.f32 %v149, %v149
    %v151 = vsel %vm89, %v150, 0.0
    %152 = vadd.xlane.f32.xlu0 %v151
    %v153 = vpop.xlane.xlu0 %152
    %v154 = vrot.slane %v153, 4
    %v155 = vadd.f32 %v153, %v154
    %v156 = vrot.slane %v155, 2
    %v157 = vadd.f32 %v155, %v156
    %v158 = vrot.slane %v157, 1
    %v159 = vadd.f32 %v157, %v158
    %s160 = vtos %v159
    %v161 = vlaneseq
    %v162 = vshrl.u32 %v161, 7
    %vm163 = vcmp.eq.s32.totalorder %v162, 0
    %v164 = vstv %s107
    %v165 = vsel %vm163, %v164, 0.0
    %vm166 = vcmp.eq.s32.totalorder %v162, 1
    %v167 = vstv %s117
    %v168 = vsel %vm166, %v167, %v165
    %vm169 = vcmp.eq.s32.totalorder %v162, 2
    %v170 = vstv %s127
    %v171 = vsel %vm169, %v170, %v168
    %vm172 = vcmp.eq.s32.totalorder %v162, 3
    %v173 = vstv %s138
    %v174 = vsel %vm172, %v173, %v171
    %vm175 = vcmp.eq.s32.totalorder %v162, 4
    %v176 = vstv %s148
    %v177 = vsel %vm175, %v176, %v174
    %vm178 = vcmp.eq.s32.totalorder %v162, 5
    %v179 = vstv %s160
    %v180 = vsel %vm178, %v179, %v177
    %v181 = vld [vmem:[#allocation2] sm:$0xff]
    %v182 = vadd.f32 %v181, %v180
    %183 = vst [vmem:[#allocation2] sm:$0xff] %v182
    // Predicated region
    $region38: #{tpu_custom_call.1} parent=1 // pred_check
      %p184 = pneg %p73
    $region39: #{tpu_custom_call.1} parent=1 // pred_check_branch
      %186 = sbr.rel (%p184) target = $region41
    $region40: #{tpu_custom_call.1} parent=1 // pred_region
      %v187 = vld [vmem:[#allocation2] sm:$0xff]
      %188 = vst [vmem:[#allocation11] sm:$0xff] %v187
    $region41: #{tpu_custom_call.1} parent=1 // pred_fallthru
      _
    // Predicated region
    $region42: #{tpu_custom_call.1} parent=1 // pred_check
      _
    $region43: #{tpu_custom_call.1} parent=1 // pred_check_branch
      %190 = sbr.rel (0) target = $region45
    $region44: #{tpu_custom_call.1} parent=1 // pred_region
      %192 = vsyncadd [#allocation5], 0
      %s194 = sshll.u32 [#allocation11], 4
      %s195 = int_to_ptr.vmem [resolvable:$true] %s194
      %s196 = sshll.u32 %s4, 4
      %s197 = int_to_ptr.hbm [resolvable:$true] %s196
      %199 = dma.vmem_to_hbm [thread:$0]  %s195, 128, %s197, [#allocation5]
    $region45: #{tpu_custom_call.1} parent=1 // pred_fallthru
      _
    // Predicated region
    $region46: #{tpu_custom_call.1} parent=1 // pred_check
      _
    $region47: #{tpu_custom_call.1} parent=1 // pred_check_branch
      %201 = sbr.rel (0) target = $region49
    $region48: #{tpu_custom_call.1} parent=1 // pred_region
      %203 = dma.done [#allocation5], 128
    $region49: #{tpu_custom_call.1} parent=1 // pred_fallthru
      _
    %204 = vsyncpa [#allocation4], 1
    %205 = vsyncpa [#allocation7], 1
    %206 = vsyncpa [#allocation10], 1
    %207 = vsyncpa [#allocation5], 1

</llo_original>
